<compile_context>
chip_gen: v7x
topology: tpu7x:2x2x1
jax: 0.10.0
libtpu: 0.0.40
codegen_flags: <defaults>
</compile_context>

<pallas_src>
import functools

import jax
import jax.numpy as jnp
from jax.experimental import pallas as pl
from jax.experimental.pallas import tpu as pltpu

# Keep the tiny wrapper-side weight-fusion matmuls and the pure-JAX reference
# in full f32 so the correctness check is not polluted by bf16 matmul passes.
jax.config.update("jax_default_matmul_precision", "highest")


def _round_up(a, b):
    return ((a + b - 1) // b) * b


def mlp_kernel(x_ref, w12_ref, b12_ref, w3_ref, b3_ref, o_ref):
    """Fused (Linear o Linear) -> ReLU -> Linear on one dense batch tile.

    x_ref   : (in_size, rows, 128)  VMEM  -- batch on (sublane, lane)
    w12_ref : (in_size, hidden)     SMEM  -- fused first two linears, (in, out)
    b12_ref : (hidden,)             SMEM
    w3_ref  : (out_size, hidden)    SMEM  -- PyTorch (out, in) layout
    b3_ref  : (out_size,)           SMEM
    o_ref   : (out_size, rows, 128) VMEM  -- lane-dense stores
    """
    in_size = x_ref.shape[0]
    hidden = w12_ref.shape[1]
    out_size = o_ref.shape[0]

    # Each feature slab is a dense (rows, 128) array -> full vreg utilization.
    xs = [x_ref[k] for k in range(in_size)]

    accs = [None] * out_size
    for j in range(hidden):
        # Hidden unit j: unrolled VPU broadcast multiply-adds with scalar
        # weights from SMEM, bias, ReLU.  fp32 throughout; no MXU.
        h = xs[0] * w12_ref[0, j]
        for k in range(1, in_size):
            h = h + xs[k] * w12_ref[k, j]
        h = jnp.maximum(h + b12_ref[j], 0.0)
        # Consume h immediately (fused output accumulation) so hidden
        # activations never round-trip through VMEM.
        for m in range(out_size):
            c = h * w3_ref[m, j]
            accs[m] = c if accs[m] is None else accs[m] + c

    for m in range(out_size):
        o_ref[m] = (accs[m] + b3_ref[m]).astype(o_ref.dtype)


@functools.partial(jax.jit, static_argnames=("max_tile_rows",))
def base_model_forward(x, params, *, max_tile_rows=2048):
    """x: (N, input_size) float32.  params: PyTorch-shaped weight dict."""
    w1, b1 = params["w1"], params["b1"]          # (5, 3), (5,)
    w2, b2 = params["w2"], params["b2"]          # (4, 5), (4,)
    w3, b3 = params["w3"], params["b3"]          # (1, 4), (1,)

    # Exact algebraic fusion of the first two (purely affine) layers.
    w12 = jnp.dot(w1.T, w2.T, precision=jax.lax.Precision.HIGHEST)   # (3, 4)
    b12 = jnp.dot(b1, w2.T, precision=jax.lax.Precision.HIGHEST) + b2  # (4,)
    w12 = w12.astype(jnp.float32)
    b12 = b12.astype(jnp.float32)
    w3 = w3.astype(jnp.float32)                  # (out_size, hidden) = (1, 4)
    b3 = b3.astype(jnp.float32)                  # (1,)

    n, in_size = x.shape
    out_size = w3.shape[0]

    # Batch -> (sublane, lane): pad N to a multiple of 128 (<=127 columns) and
    # split into 128-wide lane blocks.  Under jit the pad + transpose + reshape
    # fuse into a single HBM copy.
    n128 = _round_up(max(n, 1), 128)
    nblk = n128 // 128
    rows = min(nblk, max_tile_rows)
    if rows < nblk:
        rows = max((rows // 8) * 8, 8)           # keep sublane-aligned blocks
    grid = (pl.cdiv(nblk, rows),)                # ragged tail -> partial block

    xt = jnp.pad(x.astype(jnp.float32), ((0, n128 - n), (0, 0)))
    xt = xt.T.reshape(in_size, nblk, 128)

    # Explicit VMEM budget (double-buffered in/out tiles + headroom); well
    # under v7x's 64 MiB physical / 32 MiB default scoped limit.
    tile_bytes = 4 * (in_size + out_size) * rows * 128
    vmem_limit = min(max(2 * tile_bytes + (2 << 20), 16 << 20), 48 << 20)

    smem = pl.BlockSpec(memory_space=pltpu.MemorySpace.SMEM)

    out = pl.pallas_call(
        mlp_kernel,
        out_shape=jax.ShapeDtypeStruct((out_size, nblk, 128), jnp.float32),
        grid=grid,
        in_specs=[
            pl.BlockSpec((in_size, rows, 128), lambda i: (0, i, 0)),  # streamed batch
            smem, smem, smem, smem,                                   # resident weights
        ],
        out_specs=pl.BlockSpec((out_size, rows, 128), lambda i: (0, i, 0)),
        compiler_params=pltpu.CompilerParams(
            dimension_semantics=("parallel",),   # independent batch tiles
            vmem_limit_bytes=vmem_limit,
        ),
    )(xt, w12, b12, w3, b3)

    # (out_size, nblk, 128) -> (out_size, N) -> PyTorch (N, out_size).
    return out.reshape(out_size, n128)[:, :n].T


def init_params(key, input_size=3, hidden_sizes=(5, 4), output_size=1,
                weight_range=(-1.0, 1.0), bias_range=(-1.0, 1.0)):
    sizes = [input_size, *hidden_sizes, output_size]
    params = {}
    for i, (fan_in, fan_out) in enumerate(zip(sizes[:-1], sizes[1:]), start=1):
        key, kw, kb = jax.random.split(key, 3)
        params[f"w{i}"] = jax.random.uniform(
            kw, (fan_out, fan_in), jnp.float32, weight_range[0], weight_range[1])
        params[f"b{i}"] = jax.random.uniform(
            kb, (fan_out,), jnp.float32, bias_range[0], bias_range[1])
    return params


def reference_forward(x, params):
    h1 = x @ params["w1"].T + params["b1"]
    h2 = h1 @ params["w2"].T + params["b2"]
    h2 = jnp.maximum(h2, 0.0)
    return h2 @ params["w3"].T + params["b3"]


if __name__ == "__main__":
    key = jax.random.PRNGKey(0)
    key, kx = jax.random.split(key)

    params = init_params(key)

    # Small demo batch (single tile).
    x = jax.random.normal(kx, (8, 3), jnp.float32)
    out = jax.block_until_ready(base_model_forward(x, params))
    ref = reference_forward(x, params)
    assert out.shape == (8, 1)
    assert jnp.allclose(out, ref, atol=1e-5, rtol=1e-4), (out, ref)

    # Multi-tile grid with a ragged (partial) last block: N=1300 -> 11 row
    # blocks, tile of 8 row blocks -> grid=2, last block partial.
    key, kx2 = jax.random.split(key)
    x2 = jax.random.normal(kx2, (1300, 3), jnp.float32)
    out2 = jax.block_until_ready(base_model_forward(x2, params, max_tile_rows=8))
    ref2 = reference_forward(x2, params)
    assert out2.shape == (1300, 1)
    assert jnp.allclose(out2, ref2, atol=1e-5, rtol=1e-4), (out2, ref2)

    # Default large-tile path.
    key, kx3 = jax.random.split(key)
    x3 = jax.random.normal(kx3, (4096, 3), jnp.float32)
    out3 = jax.block_until_ready(base_model_forward(x3, params))
    ref3 = reference_forward(x3, params)
    assert out3.shape == (4096, 1)
    assert jnp.allclose(out3, ref3, atol=1e-5, rtol=1e-4), (out3, ref3)

    print("KERNEL_OK")
</pallas_src>

<mosaic_0001>
module attributes {stable_mosaic.version = 11 : i64} {
  func.func @mlp_kernel(%arg0: i32, %arg1: memref<3x1x128xf32, #tpu.memory_space<vmem>>, %arg2: memref<3x4xf32, #tpu.memory_space<smem>>, %arg3: memref<4xf32, #tpu.memory_space<smem>>, %arg4: memref<1x4xf32, #tpu.memory_space<smem>>, %arg5: memref<1xf32, #tpu.memory_space<smem>>, %arg6: memref<1x1x128xf32, #tpu.memory_space<vmem>>) attributes {dimension_semantics = [#tpu.dimension_semantics<parallel>], iteration_bounds = array<i64: 1>, scalar_prefetch = 0 : i64, scratch_operands = 0 : i64, tpu.core_type = #tpu.core_type<tc>, window_params = [{transform_indices = @transform_0, window_bounds = array<i64: 3, 1, 128>}, {transform_indices = @transform_1, window_bounds = array<i64: 3, 4>}, {transform_indices = @transform_2, window_bounds = array<i64: 4>}, {transform_indices = @transform_3, window_bounds = array<i64: 1, 4>}, {transform_indices = @transform_4, window_bounds = array<i64: 1>}, {transform_indices = @transform_5, window_bounds = array<i64: 1, 1, 128>}]} {
    %c0 = arith.constant 0 : index
    %c0_0 = arith.constant 0 : index
    %c0_1 = arith.constant 0 : index
    %0 = vector.load %arg1[%c0, %c0_0, %c0_1] : memref<3x1x128xf32, #tpu.memory_space<vmem>>, vector<1x1x128xf32>
    %1 = vector.shape_cast %0 : vector<1x1x128xf32> to vector<1x128xf32>
    %c1 = arith.constant 1 : index
    %c0_2 = arith.constant 0 : index
    %c0_3 = arith.constant 0 : index
    %2 = vector.load %arg1[%c1, %c0_2, %c0_3] : memref<3x1x128xf32, #tpu.memory_space<vmem>>, vector<1x1x128xf32>
    %3 = vector.shape_cast %2 : vector<1x1x128xf32> to vector<1x128xf32>
    %c2 = arith.constant 2 : index
    %c0_4 = arith.constant 0 : index
    %c0_5 = arith.constant 0 : index
    %4 = vector.load %arg1[%c2, %c0_4, %c0_5] : memref<3x1x128xf32, #tpu.memory_space<vmem>>, vector<1x1x128xf32>
    %5 = vector.shape_cast %4 : vector<1x1x128xf32> to vector<1x128xf32>
    %c0_6 = arith.constant 0 : index
    %c0_7 = arith.constant 0 : index
    %6 = memref.load %arg2[%c0_6, %c0_7] : memref<3x4xf32, #tpu.memory_space<smem>>
    %7 = vector.broadcast %6 : f32 to vector<1x128xf32>
    %8 = arith.mulf %1, %7 : vector<1x128xf32>
    %c1_8 = arith.constant 1 : index
    %c0_9 = arith.constant 0 : index
    %9 = memref.load %arg2[%c1_8, %c0_9] : memref<3x4xf32, #tpu.memory_space<smem>>
    %10 = vector.broadcast %9 : f32 to vector<1x128xf32>
    %11 = arith.mulf %3, %10 : vector<1x128xf32>
    %12 = arith.addf %8, %11 : vector<1x128xf32>
    %c2_10 = arith.constant 2 : index
    %c0_11 = arith.constant 0 : index
    %13 = memref.load %arg2[%c2_10, %c0_11] : memref<3x4xf32, #tpu.memory_space<smem>>
    %14 = vector.broadcast %13 : f32 to vector<1x128xf32>
    %15 = arith.mulf %5, %14 : vector<1x128xf32>
    %16 = arith.addf %12, %15 : vector<1x128xf32>
    %c0_12 = arith.constant 0 : index
    %17 = memref.load %arg3[%c0_12] : memref<4xf32, #tpu.memory_space<smem>>
    %18 = vector.broadcast %17 : f32 to vector<1x128xf32>
    %19 = arith.addf %16, %18 : vector<1x128xf32>
    %cst = arith.constant 0.000000e+00 : f32
    %20 = vector.broadcast %cst : f32 to vector<1x128xf32>
    %21 = arith.maximumf %19, %20 : vector<1x128xf32>
    %c0_13 = arith.constant 0 : index
    %c0_14 = arith.constant 0 : index
    %22 = memref.load %arg4[%c0_13, %c0_14] : memref<1x4xf32, #tpu.memory_space<smem>>
    %23 = vector.broadcast %22 : f32 to vector<1x128xf32>
    %24 = arith.mulf %21, %23 : vector<1x128xf32>
    %c0_15 = arith.constant 0 : index
    %c1_16 = arith.constant 1 : index
    %25 = memref.load %arg2[%c0_15, %c1_16] : memref<3x4xf32, #tpu.memory_space<smem>>
    %26 = vector.broadcast %25 : f32 to vector<1x128xf32>
    %27 = arith.mulf %1, %26 : vector<1x128xf32>
    %c1_17 = arith.constant 1 : index
    %c1_18 = arith.constant 1 : index
    %28 = memref.load %arg2[%c1_17, %c1_18] : memref<3x4xf32, #tpu.memory_space<smem>>
    %29 = vector.broadcast %28 : f32 to vector<1x128xf32>
    %30 = arith.mulf %3, %29 : vector<1x128xf32>
    %31 = arith.addf %27, %30 : vector<1x128xf32>
    %c2_19 = arith.constant 2 : index
    %c1_20 = arith.constant 1 : index
    %32 = memref.load %arg2[%c2_19, %c1_20] : memref<3x4xf32, #tpu.memory_space<smem>>
    %33 = vector.broadcast %32 : f32 to vector<1x128xf32>
    %34 = arith.mulf %5, %33 : vector<1x128xf32>
    %35 = arith.addf %31, %34 : vector<1x128xf32>
    %c1_21 = arith.constant 1 : index
    %36 = memref.load %arg3[%c1_21] : memref<4xf32, #tpu.memory_space<smem>>
    %37 = vector.broadcast %36 : f32 to vector<1x128xf32>
    %38 = arith.addf %35, %37 : vector<1x128xf32>
    %cst_22 = arith.constant 0.000000e+00 : f32
    %39 = vector.broadcast %cst_22 : f32 to vector<1x128xf32>
    %40 = arith.maximumf %38, %39 : vector<1x128xf32>
    %c0_23 = arith.constant 0 : index
    %c1_24 = arith.constant 1 : index
    %41 = memref.load %arg4[%c0_23, %c1_24] : memref<1x4xf32, #tpu.memory_space<smem>>
    %42 = vector.broadcast %41 : f32 to vector<1x128xf32>
    %43 = arith.mulf %40, %42 : vector<1x128xf32>
    %44 = arith.addf %24, %43 : vector<1x128xf32>
    %c0_25 = arith.constant 0 : index
    %c2_26 = arith.constant 2 : index
    %45 = memref.load %arg2[%c0_25, %c2_26] : memref<3x4xf32, #tpu.memory_space<smem>>
    %46 = vector.broadcast %45 : f32 to vector<1x128xf32>
    %47 = arith.mulf %1, %46 : vector<1x128xf32>
    %c1_27 = arith.constant 1 : index
    %c2_28 = arith.constant 2 : index
    %48 = memref.load %arg2[%c1_27, %c2_28] : memref<3x4xf32, #tpu.memory_space<smem>>
    %49 = vector.broadcast %48 : f32 to vector<1x128xf32>
    %50 = arith.mulf %3, %49 : vector<1x128xf32>
    %51 = arith.addf %47, %50 : vector<1x128xf32>
    %c2_29 = arith.constant 2 : index
    %c2_30 = arith.constant 2 : index
    %52 = memref.load %arg2[%c2_29, %c2_30] : memref<3x4xf32, #tpu.memory_space<smem>>
    %53 = vector.broadcast %52 : f32 to vector<1x128xf32>
    %54 = arith.mulf %5, %53 : vector<1x128xf32>
    %55 = arith.addf %51, %54 : vector<1x128xf32>
    %c2_31 = arith.constant 2 : index
    %56 = memref.load %arg3[%c2_31] : memref<4xf32, #tpu.memory_space<smem>>
    %57 = vector.broadcast %56 : f32 to vector<1x128xf32>
    %58 = arith.addf %55, %57 : vector<1x128xf32>
    %cst_32 = arith.constant 0.000000e+00 : f32
    %59 = vector.broadcast %cst_32 : f32 to vector<1x128xf32>
    %60 = arith.maximumf %58, %59 : vector<1x128xf32>
    %c0_33 = arith.constant 0 : index
    %c2_34 = arith.constant 2 : index
    %61 = memref.load %arg4[%c0_33, %c2_34] : memref<1x4xf32, #tpu.memory_space<smem>>
    %62 = vector.broadcast %61 : f32 to vector<1x128xf32>
    %63 = arith.mulf %60, %62 : vector<1x128xf32>
    %64 = arith.addf %44, %63 : vector<1x128xf32>
    %c0_35 = arith.constant 0 : index
    %c3 = arith.constant 3 : index
    %65 = memref.load %arg2[%c0_35, %c3] : memref<3x4xf32, #tpu.memory_space<smem>>
    %66 = vector.broadcast %65 : f32 to vector<1x128xf32>
    %67 = arith.mulf %1, %66 : vector<1x128xf32>
    %c1_36 = arith.constant 1 : index
    %c3_37 = arith.constant 3 : index
    %68 = memref.load %arg2[%c1_36, %c3_37] : memref<3x4xf32, #tpu.memory_space<smem>>
    %69 = vector.broadcast %68 : f32 to vector<1x128xf32>
    %70 = arith.mulf %3, %69 : vector<1x128xf32>
    %71 = arith.addf %67, %70 : vector<1x128xf32>
    %c2_38 = arith.constant 2 : index
    %c3_39 = arith.constant 3 : index
    %72 = memref.load %arg2[%c2_38, %c3_39] : memref<3x4xf32, #tpu.memory_space<smem>>
    %73 = vector.broadcast %72 : f32 to vector<1x128xf32>
    %74 = arith.mulf %5, %73 : vector<1x128xf32>
    %75 = arith.addf %71, %74 : vector<1x128xf32>
    %c3_40 = arith.constant 3 : index
    %76 = memref.load %arg3[%c3_40] : memref<4xf32, #tpu.memory_space<smem>>
    %77 = vector.broadcast %76 : f32 to vector<1x128xf32>
    %78 = arith.addf %75, %77 : vector<1x128xf32>
    %cst_41 = arith.constant 0.000000e+00 : f32
    %79 = vector.broadcast %cst_41 : f32 to vector<1x128xf32>
    %80 = arith.maximumf %78, %79 : vector<1x128xf32>
    %c0_42 = arith.constant 0 : index
    %c3_43 = arith.constant 3 : index
    %81 = memref.load %arg4[%c0_42, %c3_43] : memref<1x4xf32, #tpu.memory_space<smem>>
    %82 = vector.broadcast %81 : f32 to vector<1x128xf32>
    %83 = arith.mulf %80, %82 : vector<1x128xf32>
    %84 = arith.addf %64, %83 : vector<1x128xf32>
    %c0_44 = arith.constant 0 : index
    %85 = memref.load %arg5[%c0_44] : memref<1xf32, #tpu.memory_space<smem>>
    %86 = vector.broadcast %85 : f32 to vector<1x128xf32>
    %87 = arith.addf %84, %86 : vector<1x128xf32>
    %c0_45 = arith.constant 0 : index
    %c0_46 = arith.constant 0 : index
    %c0_47 = arith.constant 0 : index
    %88 = vector.load %arg6[%c0_45, %c0_46, %c0_47] : memref<1x1x128xf32, #tpu.memory_space<vmem>>, vector<1x1x128xf32>
    %89 = vector.shape_cast %88 : vector<1x1x128xf32> to vector<1x128xf32>
    %90 = vector.shape_cast %87 : vector<1x128xf32> to vector<1x1x128xf32>
    tpu.vector_store %arg6[%c0_45, %c0_46, %c0_47], %90 {strides = array<i32>} : memref<1x1x128xf32, #tpu.memory_space<vmem>>, vector<1x1x128xf32>,
    return
  }
  func.func @transform_0(%arg0: i32) -> (i32, i32, i32) {
    %c0_i32 = arith.constant 0 : i32
    %c0_i32_0 = arith.constant 0 : i32
    %c0_i32_1 = arith.constant 0 : i32
    return %c0_i32, %arg0, %c0_i32_0 : i32, i32, i32
  }
  func.func @transform_1(%arg0: i32) -> (i32, i32) {
    %c0_i32 = arith.constant 0 : i32
    %c0_i32_0 = arith.constant 0 : i32
    %c0_i32_1 = arith.constant 0 : i32
    return %c0_i32, %c0_i32_0 : i32, i32
  }
  func.func @transform_2(%arg0: i32) -> i32 {
    %c0_i32 = arith.constant 0 : i32
    %c0_i32_0 = arith.constant 0 : i32
    return %c0_i32 : i32
  }
  func.func @transform_3(%arg0: i32) -> (i32, i32) {
    %c0_i32 = arith.constant 0 : i32
    %c0_i32_0 = arith.constant 0 : i32
    %c0_i32_1 = arith.constant 0 : i32
    return %c0_i32, %c0_i32_0 : i32, i32
  }
  func.func @transform_4(%arg0: i32) -> i32 {
    %c0_i32 = arith.constant 0 : i32
    %c0_i32_0 = arith.constant 0 : i32
    return %c0_i32 : i32
  }
  func.func @transform_5(%arg0: i32) -> (i32, i32, i32) {
    %c0_i32 = arith.constant 0 : i32
    %c0_i32_0 = arith.constant 0 : i32
    %c0_i32_1 = arith.constant 0 : i32
    return %c0_i32, %arg0, %c0_i32_0 : i32, i32, i32
  }
}

</mosaic_0001>

<llo_original>
// kernel: base_model_forward.1
$region0: #{base_model_forward.1}
  #allocation0 [shape = 'u32[]', space=smem, size = 0x4, offset = 0x4, fixed_abs, tag = 'smem constant byte address 0x4 - core index']
  #allocation1 [shape = 'u32[144,128]{1,0:T(1,128)}', space=vmem, size = 0x12000, scoped, tag = 'internal scratch']
  #allocation2 [shape = 'f32[1]{0:T(128)S(6)}', space=smem, size = 0x200, scoped, tag = 'scoped memory for base_model_forward.1']
  %s0 = inlined_call_operand.vmem [shape: f32[3,1,128], index: 0, kind: input, shape index: {}]
  %s1 = inlined_call_operand.vmem [shape: f32[3,4], index: 1, kind: input, shape index: {}]
  %s2 = inlined_call_operand.vmem [shape: f32[4], index: 2, kind: input, shape index: {}]
  %s3 = inlined_call_operand.vmem [shape: f32[1,4], index: 3, kind: input, shape index: {}]
  %s4 = inlined_call_operand.<no memory space> [shape: f32[1], index: 4, kind: input, shape index: {}]
  %s5 = inlined_call_operand.vmem [shape: f32[1,1,128], index: 5, kind: output, shape index: {}]
  %s6 = sld [smem:[#allocation0]]
  $region42: #{base_model_forward.1} parent=0
    _
  %s8 = ssub.s32 1, %s6
  %s9 = scalar_select 0, %s8, %s6
  %10 = sst [smem:[#allocation2]] %s4
  $region1: #{base_model_forward.1} parent=0
    #allocation3 [shape = 'u8[2048]{0}', space=smem, size = 0x800, scoped, tag = 'input window, operand 1, single buffered']
    #allocation4 [shape = 's32[1]{0}', space=sflag, size = 0x4, scoped, tag = 'scoped memory for base_model_forward.1']
    #allocation5 [shape = 'u8[512]{0}', space=smem, size = 0x200, scoped, tag = 'input window, operand 2, single buffered']
    #allocation6 [shape = 's32[1]{0}', space=sflag, size = 0x4, scoped, tag = 'scoped memory for base_model_forward.1']
    #allocation7 [shape = 'u8[512]{0}', space=smem, size = 0x200, scoped, tag = 'input window, operand 3, single buffered']
    %11 = vsyncpa [#allocation4], 0
    %12 = vsyncpa [#allocation6], 0
    // Predicated region
    $region2: #{base_model_forward.1} parent=1 // pred_check
      _
    $region3: #{base_model_forward.1} parent=1 // pred_check_branch
      %14 = sbr.rel (0) target = $region5
    $region4: #{base_model_forward.1} parent=1 // pred_region
      _
    $region5: #{base_model_forward.1} parent=1 // pred_fallthru
      _
    // Predicated region
    $region6: #{base_model_forward.1} parent=1 // pred_check
      _
    $region7: #{base_model_forward.1} parent=1 // pred_check_branch
      %16 = sbr.rel (0) target = $region9
    $region8: #{base_model_forward.1} parent=1 // pred_region
      %s18 = ssub.s32 64, 64
      %19 = vsyncadd [#allocation4], %s18
      %s21 = sshll.u32 %s1, 4
      %s22 = int_to_ptr.vmem [resolvable:$true] %s21
      %24 = dma.vmem_to_smem %s22, 64, [#allocation3], [#allocation4]
    $region9: #{base_model_forward.1} parent=1 // pred_fallthru
      _
    // Predicated region
    $region10: #{base_model_forward.1} parent=1 // pred_check
      _
    $region11: #{base_model_forward.1} parent=1 // pred_check_branch
      %26 = sbr.rel (0) target = $region13
    $region12: #{base_model_forward.1} parent=1 // pred_region
      %s28 = ssub.s32 16, 16
      %29 = vsyncadd [#allocation6], %s28
      %s31 = sshll.u32 %s2, 4
      %s32 = int_to_ptr.vmem [resolvable:$true] %s31
      %34 = dma.vmem_to_smem %s32, 16, [#allocation5], [#allocation6]
    $region13: #{base_model_forward.1} parent=1 // pred_fallthru
      _
    // Predicated region
    $region14: #{base_model_forward.1} parent=1 // pred_check
      _
    $region15: #{base_model_forward.1} parent=1 // pred_check_branch
      %36 = sbr.rel (0) target = $region17
    $region16: #{base_model_forward.1} parent=1 // pred_region
      %s38 = ssub.s32 16, 16
      %39 = vsyncadd [#allocation6], %s38
      %s41 = sshll.u32 %s3, 4
      %s42 = int_to_ptr.vmem [resolvable:$true] %s41
      %44 = dma.vmem_to_smem %s42, 16, [#allocation7], [#allocation6]
    $region17: #{base_model_forward.1} parent=1 // pred_fallthru
      _
    // Predicated region
    $region18: #{base_model_forward.1} parent=1 // pred_check
      _
    $region19: #{base_model_forward.1} parent=1 // pred_check_branch
      %46 = sbr.rel (0) target = $region21
    $region20: #{base_model_forward.1} parent=1 // pred_region
      _
    $region21: #{base_model_forward.1} parent=1 // pred_fallthru
      _
    // Predicated region
    $region22: #{base_model_forward.1} parent=1 // pred_check
      _
    $region23: #{base_model_forward.1} parent=1 // pred_check_branch
      %48 = sbr.rel (0) target = $region25
    $region24: #{base_model_forward.1} parent=1 // pred_region
      %49 = dma.done [#allocation4], 64
    $region25: #{base_model_forward.1} parent=1 // pred_fallthru
      _
    // Predicated region
    $region26: #{base_model_forward.1} parent=1 // pred_check
      _
    $region27: #{base_model_forward.1} parent=1 // pred_check_branch
      %51 = sbr.rel (0) target = $region29
    $region28: #{base_model_forward.1} parent=1 // pred_region
      %52 = dma.done [#allocation6], 16
    $region29: #{base_model_forward.1} parent=1 // pred_fallthru
      _
    // Predicated region
    $region30: #{base_model_forward.1} parent=1 // pred_check
      _
    $region31: #{base_model_forward.1} parent=1 // pred_check_branch
      %54 = sbr.rel (0) target = $region33
    $region32: #{base_model_forward.1} parent=1 // pred_region
      %55 = dma.done [#allocation6], 16
    $region33: #{base_model_forward.1} parent=1 // pred_fallthru
      _
    %56 = sfence
    %v57 = vld [vmem:[%s0] sm:$0x1]
    %s58 = scalar_lea.vmem %s0, 1
    %v59 = vld [vmem:[%s58] sm:$0x1]
    %s60 = scalar_lea.vmem %s0, 2
    %v61 = vld [vmem:[%s60] sm:$0x1]
    %s62 = sld [smem:[#allocation3]]
    %v63 = vstv %s62
    %v64 = vmul.f32 %v57, %v63
    %s65 = sld [smem:[#allocation3 + $0x80]]
    %v66 = vstv %s65
    %v67 = vmul.f32 %v59, %v66
    %v68 = vadd.f32 %v64, %v67
    %s69 = sld [smem:[#allocation3 + $0x100]]
    %v70 = vstv %s69
    %v71 = vmul.f32 %v61, %v70
    %v72 = vadd.f32 %v68, %v71
    %s73 = sld [smem:[#allocation5]]
    %v74 = vstv %s73
    %v75 = vadd.f32 %v72, %v74
    %v76 = vmax.f32 %v75, 0.0
    %s77 = sld [smem:[#allocation7]]
    %v78 = vstv %s77
    %v79 = vmul.f32 %v76, %v78
    %s80 = sld [smem:[#allocation3 + $0x1]]
    %v81 = vstv %s80
    %v82 = vmul.f32 %v57, %v81
    %s83 = sld [smem:[#allocation3 + $0x81]]
    %v84 = vstv %s83
    %v85 = vmul.f32 %v59, %v84
    %v86 = vadd.f32 %v82, %v85
    %s87 = sld [smem:[#allocation3 + $0x101]]
    %v88 = vstv %s87
    %v89 = vmul.f32 %v61, %v88
    %v90 = vadd.f32 %v86, %v89
    %s91 = sld [smem:[#allocation5 + $0x1]]
    %v92 = vstv %s91
    %v93 = vadd.f32 %v90, %v92
    %v94 = vmax.f32 %v93, 0.0
    %s95 = sld [smem:[#allocation7 + $0x1]]
    %v96 = vstv %s95
    %v97 = vmul.f32 %v94, %v96
    %v98 = vadd.f32 %v79, %v97
    %s99 = sld [smem:[#allocation3 + $0x2]]
    %v100 = vstv %s99
    %v101 = vmul.f32 %v57, %v100
    %s102 = sld [smem:[#allocation3 + $0x82]]
    %v103 = vstv %s102
    %v104 = vmul.f32 %v59, %v103
    %v105 = vadd.f32 %v101, %v104
    %s106 = sld [smem:[#allocation3 + $0x102]]
    %v107 = vstv %s106
    %v108 = vmul.f32 %v61, %v107
    %v109 = vadd.f32 %v105, %v108
    %s110 = sld [smem:[#allocation5 + $0x2]]
    %v111 = vstv %s110
    %v112 = vadd.f32 %v109, %v111
    %v113 = vmax.f32 %v112, 0.0
    %s114 = sld [smem:[#allocation7 + $0x2]]
    %v115 = vstv %s114
    %v116 = vmul.f32 %v113, %v115
    %v117 = vadd.f32 %v98, %v116
    %s118 = sld [smem:[#allocation3 + $0x3]]
    %v119 = vstv %s118
    %v120 = vmul.f32 %v57, %v119
    %s121 = sld [smem:[#allocation3 + $0x83]]
    %v122 = vstv %s121
    %v123 = vmul.f32 %v59, %v122
    %v124 = vadd.f32 %v120, %v123
    %s125 = sld [smem:[#allocation3 + $0x103]]
    %v126 = vstv %s125
    %v127 = vmul.f32 %v61, %v126
    %v128 = vadd.f32 %v124, %v127
    %s129 = sld [smem:[#allocation5 + $0x3]]
    %v130 = vstv %s129
    %v131 = vadd.f32 %v128, %v130
    %v132 = vmax.f32 %v131, 0.0
    %s133 = sld [smem:[#allocation7 + $0x3]]
    %v134 = vstv %s133
    %v135 = vmul.f32 %v132, %v134
    %v136 = vadd.f32 %v117, %v135
    %s137 = sld [smem:[#allocation2]]
    %v138 = vstv %s137
    %v139 = vadd.f32 %v136, %v138
    %140 = vst [vmem:[%s5] sm:$0x1] %v139
    // Predicated region
    $region34: #{base_model_forward.1} parent=1 // pred_check
      _
    $region35: #{base_model_forward.1} parent=1 // pred_check_branch
      %142 = sbr.rel (0) target = $region37
    $region36: #{base_model_forward.1} parent=1 // pred_region
      _
    $region37: #{base_model_forward.1} parent=1 // pred_fallthru
      _
    // Predicated region
    $region38: #{base_model_forward.1} parent=1 // pred_check
      _
    $region39: #{base_model_forward.1} parent=1 // pred_check_branch
      %144 = sbr.rel (0) target = $region41
    $region40: #{base_model_forward.1} parent=1 // pred_region
      _
    $region41: #{base_model_forward.1} parent=1 // pred_fallthru
      _
    %145 = vsyncpa [#allocation4], 1
    %146 = vsyncpa [#allocation6], 1

</llo_original>
